<compile_context>
chip_gen: v7x
topology: tpu7x:2x2x1
jax: 0.10.0
libtpu: 0.0.40
codegen_flags: <defaults>
</compile_context>

<pallas_src>
import jax
import jax.numpy as jnp
from jax.experimental import pallas as pl
from jax.experimental.pallas import tpu as pltpu

IMAGE_SIZE = 28 * 28   # 784
OUT = 10               # real number of classes
PAD = 128              # lane-padded feature width for the hidden layers
NEG_INF = -1e30        # host-side Python float (folded into padded b5 lanes)

# (fan_in, fan_out) of each nn.Linear in Model_E
LAYER_DIMS = [
    (IMAGE_SIZE, 128),  # fc0
    (128, 64),          # fc1
    (64, 10),           # fc2
    (10, 10),           # fc3
    (10, 10),           # fc4
    (10, 10),           # fc5 (no ReLU, feeds log_softmax)
]


def mlp_kernel(x_ref, w0_ref, ws_ref, bs_ref, o_ref):
    # x: (tile_b, 784) f32 -> cast to bf16 on the VPU (no wrapper pre-pass).
    h = x_ref[...].astype(jnp.bfloat16)

    # fc0: (tile_b,784)@(784,128) on the MXU, f32 accumulation, ReLU.
    z = jnp.dot(h, w0_ref[...], preferred_element_type=jnp.float32)
    z = z + bs_ref[pl.ds(0, 1), :]
    h = jnp.maximum(z, 0.0).astype(jnp.bfloat16)

    # fc1..fc4: lane-padded 128x128 bf16 matmuls + ReLU.
    for li in range(4):
        z = jnp.dot(h, ws_ref[li], preferred_element_type=jnp.float32)
        z = z + bs_ref[pl.ds(li + 1, 1), :]
        h = jnp.maximum(z, 0.0).astype(jnp.bfloat16)

    # fc5 (no ReLU). Padded logit lanes get -1e30 directly from the padded
    # bias, so they contribute nothing to the max / exp-sum below.
    logits = jnp.dot(h, ws_ref[4], preferred_element_type=jnp.float32)
    logits = logits + bs_ref[pl.ds(5, 1), :]

    # Numerically stable log_softmax in f32; store bf16, lane-dense (128 wide).
    m = jnp.max(logits, axis=-1, keepdims=True)
    shifted = logits - m
    lse = jnp.log(jnp.sum(jnp.exp(shifted), axis=-1, keepdims=True))
    o_ref[...] = (shifted - lse).astype(o_ref.dtype)


def init_params(key):
    """PyTorch nn.Linear-style uniform init at the TRUE (unpadded) sizes."""
    params = []
    keys = jax.random.split(key, len(LAYER_DIMS))
    for k, (fan_in, fan_out) in zip(keys, LAYER_DIMS):
        k1, k2 = jax.random.split(k)
        bound = float(fan_in) ** -0.5
        w = jax.random.uniform(k1, (fan_in, fan_out), jnp.float32, -bound, bound)
        b = jax.random.uniform(k2, (fan_out,), jnp.float32, -bound, bound)
        params.append((w, b))
    return params


def pad_params_for_kernel(params):
    """Pack params for the kernel.

    Returns:
      w0_p:   (784, 128) bf16              (fc0 weight, already 128-wide)
      wstack: (5, 128, 128) bf16, zero-padded (fc1..fc5 weights)
      bstack: (6, 128) f32, zero-padded; bstack[5, 10:] = -1e30 so padded
              logit lanes are masked without any in-kernel iota/select.
    """
    (w0, _b0) = params[0]
    w0_p = w0.astype(jnp.bfloat16)                      # (784, 128)

    wstack = jnp.zeros((5, PAD, PAD), jnp.bfloat16)
    for idx, (w, _b) in enumerate(params[1:]):
        fi, fo = w.shape
        wstack = wstack.at[idx, :fi, :fo].set(w.astype(jnp.bfloat16))

    bstack = jnp.zeros((len(params), PAD), jnp.float32)
    for idx, (_w, b) in enumerate(params):
        bstack = bstack.at[idx, : b.shape[0]].set(b)
    bstack = bstack.at[len(params) - 1, OUT:].set(NEG_INF)

    return w0_p, wstack, bstack


def _round_up(x, m):
    return ((x + m - 1) // m) * m


def model_e_forward(x, params, *, max_tile_b=1024):
    """x: (B, 1, 28, 28) or (B, 784). Returns log-probs (B, 10) float32."""
    x2d = x.reshape(-1, IMAGE_SIZE).astype(jnp.float32)   # no-op if already f32
    B = x2d.shape[0]

    # Adaptive batch tile: big enough to amortize per-grid-step overhead,
    # small enough to avoid padding tiny batches up to 256+ rows.
    # (For B > max_tile_b the grid has >= 2 tiles -> both v7x TensorCores busy.)
    tile_b = min(max_tile_b, _round_up(B, 16))
    n_tiles = pl.cdiv(B, tile_b)
    B_pad = n_tiles * tile_b
    if B_pad != B:
        x2d = jnp.pad(x2d, ((0, B_pad - B), (0, 0)))

    w0_p, wstack, bstack = pad_params_for_kernel(params)

    in_specs = [
        pl.BlockSpec((tile_b, IMAGE_SIZE), lambda i: (i, 0)),      # x (f32)
        pl.BlockSpec(w0_p.shape, lambda i: (0, 0)),                # fc0 weight
        pl.BlockSpec(wstack.shape, lambda i: (0, 0, 0)),           # fc1..5 weights
        pl.BlockSpec(bstack.shape, lambda i: (0, 0)),              # biases
    ]

    out = pl.pallas_call(
        mlp_kernel,
        out_shape=jax.ShapeDtypeStruct((B_pad, PAD), jnp.bfloat16),
        grid_spec=pltpu.PrefetchScalarGridSpec(
            num_scalar_prefetch=0,
            grid=(n_tiles,),
            in_specs=in_specs,
            out_specs=pl.BlockSpec((tile_b, PAD), lambda i: (i, 0)),
        ),
        compiler_params=pltpu.CompilerParams(
            dimension_semantics=("parallel",),
        ),
    )(x2d, w0_p, wstack, bstack)

    return out[:B, :OUT].astype(jnp.float32)


def model_e_reference(x, params):
    """Pure-JAX f32 reference matching the PyTorch forward."""
    h = x.reshape(-1, IMAGE_SIZE).astype(jnp.float32)
    for i, (w, b) in enumerate(params):
        h = h @ w + b
        if i < len(params) - 1:
            h = jnp.maximum(h, 0.0)
    return jax.nn.log_softmax(h, axis=-1)


if __name__ == "__main__":
    key = jax.random.PRNGKey(0)
    kp, kx = jax.random.split(key)
    params = init_params(kp)

    # Small MNIST-like batch: (B, 1, 28, 28)
    B = 8
    x = jax.random.normal(kx, (B, 1, 28, 28), jnp.float32)

    out = jax.block_until_ready(model_e_forward(x, params))

    assert out.shape == (B, OUT)

    # log_softmax rows should sum (in prob space) to ~1 (bf16 storage -> loose tol)
    row_sums = jnp.sum(jnp.exp(out), axis=-1)
    assert bool(jnp.all(jnp.abs(row_sums - 1.0) < 2e-2))

    # matches the f32 reference (bf16 matmuls/activations -> loose tolerance)
    ref = model_e_reference(x, params)
    assert bool(jnp.max(jnp.abs(out - ref)) < 0.1)

    print("KERNEL_OK")
</pallas_src>

<mosaic_0001>
module attributes {stable_mosaic.version = 11 : i64} {
  func.func @mlp_kernel(%arg0: i32, %arg1: memref<16x784xf32, #tpu.memory_space<vmem>>, %arg2: memref<784x128xbf16, #tpu.memory_space<vmem>>, %arg3: memref<5x128x128xbf16, #tpu.memory_space<vmem>>, %arg4: memref<6x128xf32, #tpu.memory_space<vmem>>, %arg5: memref<16x128xbf16, #tpu.memory_space<vmem>>) attributes {dimension_semantics = [#tpu.dimension_semantics<parallel>], iteration_bounds = array<i64: 1>, scalar_prefetch = 0 : i64, scratch_operands = 0 : i64, tpu.core_type = #tpu.core_type<tc>, window_params = [{transform_indices = @transform_0, window_bounds = array<i64: 16, 784>}, {pipeline_mode = #tpu.pipeline_mode<synchronous>, transform_indices = @transform_1, window_bounds = array<i64: 784, 128>}, {pipeline_mode = #tpu.pipeline_mode<synchronous>, transform_indices = @transform_2, window_bounds = array<i64: 5, 128, 128>}, {pipeline_mode = #tpu.pipeline_mode<synchronous>, transform_indices = @transform_3, window_bounds = array<i64: 6, 128>}, {transform_indices = @transform_4, window_bounds = array<i64: 16, 128>}]} {
    %c0 = arith.constant 0 : index
    %c0_0 = arith.constant 0 : index
    %0 = vector.load %arg1[%c0, %c0_0] : memref<16x784xf32, #tpu.memory_space<vmem>>, vector<16x784xf32>
    %1 = arith.truncf %0 : vector<16x784xf32> to vector<16x784xbf16>
    %c0_1 = arith.constant 0 : index
    %c0_2 = arith.constant 0 : index
    %2 = vector.load %arg2[%c0_1, %c0_2] : memref<784x128xbf16, #tpu.memory_space<vmem>>, vector<784x128xbf16>
    %cst = arith.constant dense<0.000000e+00> : vector<16x128xf32>
    %3 = tpu.matmul %1, %2, %cst {dimension_numbers = #tpu.dot_dimension_numbers<[1], [0], [0], [1], [0, 0, 1, 1], [], []>} : vector<16x784xbf16>, vector<784x128xbf16>, vector<16x128xf32> -> vector<16x128xf32>
    %c0_3 = arith.constant 0 : index
    %c0_4 = arith.constant 0 : index
    %4 = vector.load %arg4[%c0_3, %c0_4] : memref<6x128xf32, #tpu.memory_space<vmem>>, vector<1x128xf32>
    %5 = vector.broadcast %4 : vector<1x128xf32> to vector<16x128xf32>
    %6 = arith.addf %3, %5 : vector<16x128xf32>
    %cst_5 = arith.constant 0.000000e+00 : f32
    %7 = vector.broadcast %cst_5 : f32 to vector<16x128xf32>
    %8 = arith.maximumf %6, %7 : vector<16x128xf32>
    %9 = arith.truncf %8 : vector<16x128xf32> to vector<16x128xbf16>
    %c0_6 = arith.constant 0 : index
    %c0_7 = arith.constant 0 : index
    %c0_8 = arith.constant 0 : index
    %10 = vector.load %arg3[%c0_6, %c0_7, %c0_8] : memref<5x128x128xbf16, #tpu.memory_space<vmem>>, vector<1x128x128xbf16>
    %11 = vector.shape_cast %10 : vector<1x128x128xbf16> to vector<128x128xbf16>
    %cst_9 = arith.constant dense<0.000000e+00> : vector<16x128xf32>
    %12 = tpu.matmul %9, %11, %cst_9 {dimension_numbers = #tpu.dot_dimension_numbers<[1], [0], [0], [1], [0, 0, 1, 1], [], []>} : vector<16x128xbf16>, vector<128x128xbf16>, vector<16x128xf32> -> vector<16x128xf32>
    %c1 = arith.constant 1 : index
    %c0_10 = arith.constant 0 : index
    %13 = vector.load %arg4[%c1, %c0_10] : memref<6x128xf32, #tpu.memory_space<vmem>>, vector<1x128xf32>
    %14 = vector.broadcast %13 : vector<1x128xf32> to vector<16x128xf32>
    %15 = arith.addf %12, %14 : vector<16x128xf32>
    %cst_11 = arith.constant 0.000000e+00 : f32
    %16 = vector.broadcast %cst_11 : f32 to vector<16x128xf32>
    %17 = arith.maximumf %15, %16 : vector<16x128xf32>
    %18 = arith.truncf %17 : vector<16x128xf32> to vector<16x128xbf16>
    %c1_12 = arith.constant 1 : index
    %c0_13 = arith.constant 0 : index
    %c0_14 = arith.constant 0 : index
    %19 = vector.load %arg3[%c1_12, %c0_13, %c0_14] : memref<5x128x128xbf16, #tpu.memory_space<vmem>>, vector<1x128x128xbf16>
    %20 = vector.shape_cast %19 : vector<1x128x128xbf16> to vector<128x128xbf16>
    %cst_15 = arith.constant dense<0.000000e+00> : vector<16x128xf32>
    %21 = tpu.matmul %18, %20, %cst_15 {dimension_numbers = #tpu.dot_dimension_numbers<[1], [0], [0], [1], [0, 0, 1, 1], [], []>} : vector<16x128xbf16>, vector<128x128xbf16>, vector<16x128xf32> -> vector<16x128xf32>
    %c2 = arith.constant 2 : index
    %c0_16 = arith.constant 0 : index
    %22 = vector.load %arg4[%c2, %c0_16] : memref<6x128xf32, #tpu.memory_space<vmem>>, vector<1x128xf32>
    %23 = vector.broadcast %22 : vector<1x128xf32> to vector<16x128xf32>
    %24 = arith.addf %21, %23 : vector<16x128xf32>
    %cst_17 = arith.constant 0.000000e+00 : f32
    %25 = vector.broadcast %cst_17 : f32 to vector<16x128xf32>
    %26 = arith.maximumf %24, %25 : vector<16x128xf32>
    %27 = arith.truncf %26 : vector<16x128xf32> to vector<16x128xbf16>
    %c2_18 = arith.constant 2 : index
    %c0_19 = arith.constant 0 : index
    %c0_20 = arith.constant 0 : index
    %28 = vector.load %arg3[%c2_18, %c0_19, %c0_20] : memref<5x128x128xbf16, #tpu.memory_space<vmem>>, vector<1x128x128xbf16>
    %29 = vector.shape_cast %28 : vector<1x128x128xbf16> to vector<128x128xbf16>
    %cst_21 = arith.constant dense<0.000000e+00> : vector<16x128xf32>
    %30 = tpu.matmul %27, %29, %cst_21 {dimension_numbers = #tpu.dot_dimension_numbers<[1], [0], [0], [1], [0, 0, 1, 1], [], []>} : vector<16x128xbf16>, vector<128x128xbf16>, vector<16x128xf32> -> vector<16x128xf32>
    %c3 = arith.constant 3 : index
    %c0_22 = arith.constant 0 : index
    %31 = vector.load %arg4[%c3, %c0_22] : memref<6x128xf32, #tpu.memory_space<vmem>>, vector<1x128xf32>
    %32 = vector.broadcast %31 : vector<1x128xf32> to vector<16x128xf32>
    %33 = arith.addf %30, %32 : vector<16x128xf32>
    %cst_23 = arith.constant 0.000000e+00 : f32
    %34 = vector.broadcast %cst_23 : f32 to vector<16x128xf32>
    %35 = arith.maximumf %33, %34 : vector<16x128xf32>
    %36 = arith.truncf %35 : vector<16x128xf32> to vector<16x128xbf16>
    %c3_24 = arith.constant 3 : index
    %c0_25 = arith.constant 0 : index
    %c0_26 = arith.constant 0 : index
    %37 = vector.load %arg3[%c3_24, %c0_25, %c0_26] : memref<5x128x128xbf16, #tpu.memory_space<vmem>>, vector<1x128x128xbf16>
    %38 = vector.shape_cast %37 : vector<1x128x128xbf16> to vector<128x128xbf16>
    %cst_27 = arith.constant dense<0.000000e+00> : vector<16x128xf32>
    %39 = tpu.matmul %36, %38, %cst_27 {dimension_numbers = #tpu.dot_dimension_numbers<[1], [0], [0], [1], [0, 0, 1, 1], [], []>} : vector<16x128xbf16>, vector<128x128xbf16>, vector<16x128xf32> -> vector<16x128xf32>
    %c4 = arith.constant 4 : index
    %c0_28 = arith.constant 0 : index
    %40 = vector.load %arg4[%c4, %c0_28] : memref<6x128xf32, #tpu.memory_space<vmem>>, vector<1x128xf32>
    %41 = vector.broadcast %40 : vector<1x128xf32> to vector<16x128xf32>
    %42 = arith.addf %39, %41 : vector<16x128xf32>
    %cst_29 = arith.constant 0.000000e+00 : f32
    %43 = vector.broadcast %cst_29 : f32 to vector<16x128xf32>
    %44 = arith.maximumf %42, %43 : vector<16x128xf32>
    %45 = arith.truncf %44 : vector<16x128xf32> to vector<16x128xbf16>
    %c4_30 = arith.constant 4 : index
    %c0_31 = arith.constant 0 : index
    %c0_32 = arith.constant 0 : index
    %46 = vector.load %arg3[%c4_30, %c0_31, %c0_32] : memref<5x128x128xbf16, #tpu.memory_space<vmem>>, vector<1x128x128xbf16>
    %47 = vector.shape_cast %46 : vector<1x128x128xbf16> to vector<128x128xbf16>
    %cst_33 = arith.constant dense<0.000000e+00> : vector<16x128xf32>
    %48 = tpu.matmul %45, %47, %cst_33 {dimension_numbers = #tpu.dot_dimension_numbers<[1], [0], [0], [1], [0, 0, 1, 1], [], []>} : vector<16x128xbf16>, vector<128x128xbf16>, vector<16x128xf32> -> vector<16x128xf32>
    %c5 = arith.constant 5 : index
    %c0_34 = arith.constant 0 : index
    %49 = vector.load %arg4[%c5, %c0_34] : memref<6x128xf32, #tpu.memory_space<vmem>>, vector<1x128xf32>
    %50 = vector.broadcast %49 : vector<1x128xf32> to vector<16x128xf32>
    %51 = arith.addf %48, %50 : vector<16x128xf32>
    %cst_35 = arith.constant dense<0xFF800000> : vector<16xf32>
    %52 = vector.multi_reduction <maximumf>, %51, %cst_35 [1] : vector<16x128xf32> to vector<16xf32>
    %53 = vector.shape_cast %52 : vector<16xf32> to vector<16x1xf32>
    %54 = vector.broadcast %53 : vector<16x1xf32> to vector<16x128xf32>
    %55 = arith.subf %51, %54 : vector<16x128xf32>
    %56 = math.exp %55 : vector<16x128xf32>
    %cst_36 = arith.constant dense<0.000000e+00> : vector<16xf32>
    %57 = vector.multi_reduction <add>, %56, %cst_36 [1] : vector<16x128xf32> to vector<16xf32>
    %58 = vector.shape_cast %57 : vector<16xf32> to vector<16x1xf32>
    %59 = math.log %58 : vector<16x1xf32>
    %60 = vector.broadcast %59 : vector<16x1xf32> to vector<16x128xf32>
    %61 = arith.subf %55, %60 : vector<16x128xf32>
    %62 = arith.truncf %61 : vector<16x128xf32> to vector<16x128xbf16>
    %c0_37 = arith.constant 0 : index
    %c0_38 = arith.constant 0 : index
    %63 = vector.load %arg5[%c0_37, %c0_38] : memref<16x128xbf16, #tpu.memory_space<vmem>>, vector<16x128xbf16>
    tpu.vector_store %arg5[%c0_37, %c0_38], %62 {strides = array<i32>} : memref<16x128xbf16, #tpu.memory_space<vmem>>, vector<16x128xbf16>,
    return
  }
  func.func @transform_0(%arg0: i32) -> (i32, i32) {
    %c0_i32 = arith.constant 0 : i32
    %c0_i32_0 = arith.constant 0 : i32
    return %arg0, %c0_i32 : i32, i32
  }
  func.func @transform_1(%arg0: i32) -> (i32, i32) {
    %c0_i32 = arith.constant 0 : i32
    %c0_i32_0 = arith.constant 0 : i32
    %c0_i32_1 = arith.constant 0 : i32
    return %c0_i32, %c0_i32_0 : i32, i32
  }
  func.func @transform_2(%arg0: i32) -> (i32, i32, i32) {
    %c0_i32 = arith.constant 0 : i32
    %c0_i32_0 = arith.constant 0 : i32
    %c0_i32_1 = arith.constant 0 : i32
    %c0_i32_2 = arith.constant 0 : i32
    return %c0_i32, %c0_i32_0, %c0_i32_1 : i32, i32, i32
  }
  func.func @transform_3(%arg0: i32) -> (i32, i32) {
    %c0_i32 = arith.constant 0 : i32
    %c0_i32_0 = arith.constant 0 : i32
    %c0_i32_1 = arith.constant 0 : i32
    return %c0_i32, %c0_i32_0 : i32, i32
  }
  func.func @transform_4(%arg0: i32) -> (i32, i32) {
    %c0_i32 = arith.constant 0 : i32
    %c0_i32_0 = arith.constant 0 : i32
    return %arg0, %c0_i32 : i32, i32
  }
}

</mosaic_0001>

<llo_original>
// kernel: tpu_custom_call.1
$region0: #{tpu_custom_call.1}
  #allocation0 [shape = 'u32[]', space=smem, size = 0x4, offset = 0x4, fixed_abs, tag = 'smem constant byte address 0x4 - core index']
  #allocation1 [shape = 'u32[144,128]{1,0:T(1,128)}', space=vmem, size = 0x12000, scoped, tag = 'internal scratch']
  %s0 = inlined_call_operand.hbm [shape: f32[16,784], index: 0, kind: input, shape index: {}]
  %s1 = inlined_call_operand.hbm [shape: bf16[784,128], index: 1, kind: input, shape index: {}]
  %s2 = inlined_call_operand.hbm [shape: bf16[5,128,128], index: 2, kind: input, shape index: {}]
  %s3 = inlined_call_operand.vmem [shape: f32[6,128], index: 3, kind: input, shape index: {}]
  %s4 = inlined_call_operand.hbm [shape: bf16[16,128], index: 4, kind: output, shape index: {}]
  %s5 = sld [smem:[#allocation0]]
  $region38: #{tpu_custom_call.1} parent=0
    _
  %s7 = ssub.s32 1, %s5
  %s8 = scalar_select 0, %s7, %s5
  $region1: #{tpu_custom_call.1} parent=0
    #allocation2 [shape = 'u8[57344]{0}', space=vmem, size = 0xe000, scoped, tag = 'input window, operand 0, single buffered']
    #allocation3 [shape = 's32[1]{0}', space=sflag, size = 0x4, scoped, tag = 'scoped memory for tpu_custom_call.1']
    #allocation4 [shape = 's32[1]{0}', space=sflag, size = 0x4, scoped, tag = 'scoped memory for tpu_custom_call.1']
    #allocation5 [shape = 'u8[200704]{0}', space=vmem, size = 0x31000, scoped, tag = 'input window, operand 1, single buffered']
    #allocation6 [shape = 's32[1]{0}', space=sflag, size = 0x4, scoped, tag = 'scoped memory for tpu_custom_call.1']
    #allocation7 [shape = 'u8[163840]{0}', space=vmem, size = 0x28000, scoped, tag = 'input window, operand 2, single buffered']
    #allocation8 [shape = 'u8[4096]{0}', space=vmem, size = 0x1000, scoped, tag = 'output window, operand 0, single buffered']
    %9 = vsyncpa [#allocation3], 0
    %10 = vsyncpa [#allocation6], 0
    %11 = vsyncpa [#allocation4], 0
    // Predicated region
    $region2: #{tpu_custom_call.1} parent=1 // pred_check
      _
    $region3: #{tpu_custom_call.1} parent=1 // pred_check_branch
      %13 = sbr.rel (0) target = $region5
    $region4: #{tpu_custom_call.1} parent=1 // pred_region
      %s15 = ssub.s32 1792, 1792
      %16 = vsyncadd [#allocation3], %s15
      %s17 = sshll.u32 [#allocation2], 4
      %s18 = int_to_ptr.vmem [resolvable:$true] %s17
      %23 = dma.hbm_to_vmem [thread:$0]  %s0, 1792, %s18, [#allocation3], 896, 896, 56
    $region5: #{tpu_custom_call.1} parent=1 // pred_fallthru
      _
    // Predicated region
    $region6: #{tpu_custom_call.1} parent=1 // pred_check
      _
    $region7: #{tpu_custom_call.1} parent=1 // pred_check_branch
      %25 = sbr.rel (0) target = $region9
    $region8: #{tpu_custom_call.1} parent=1 // pred_region
      %s27 = ssub.s32 6272, 6272
      %28 = vsyncadd [#allocation6], %s27
      %s29 = sshll.u32 [#allocation5], 4
      %s30 = int_to_ptr.vmem [resolvable:$true] %s29
      %35 = dma.hbm_to_vmem [thread:$0]  %s1, 6272, %s30, [#allocation6], 64, 64, 4
    $region9: #{tpu_custom_call.1} parent=1 // pred_fallthru
      _
    // Predicated region
    $region10: #{tpu_custom_call.1} parent=1 // pred_check
      _
    $region11: #{tpu_custom_call.1} parent=1 // pred_check_branch
      %37 = sbr.rel (0) target = $region13
    $region12: #{tpu_custom_call.1} parent=1 // pred_region
      %s39 = ssub.s32 5120, 5120
      %40 = vsyncadd [#allocation6], %s39
      %s41 = sshll.u32 [#allocation7], 4
      %s42 = int_to_ptr.vmem [resolvable:$true] %s41
      %47 = dma.hbm_to_vmem [thread:$0]  %s2, 5120, %s42, [#allocation6], 64, 64, 4
    $region13: #{tpu_custom_call.1} parent=1 // pred_fallthru
      _
    // Predicated region
    $region14: #{tpu_custom_call.1} parent=1 // pred_check
      _
    $region15: #{tpu_custom_call.1} parent=1 // pred_check_branch
      %49 = sbr.rel (0) target = $region17
    $region16: #{tpu_custom_call.1} parent=1 // pred_region
      _
    $region17: #{tpu_custom_call.1} parent=1 // pred_fallthru
      _
    // Predicated region
    $region18: #{tpu_custom_call.1} parent=1 // pred_check
      _
    $region19: #{tpu_custom_call.1} parent=1 // pred_check_branch
      %51 = sbr.rel (0) target = $region21
    $region20: #{tpu_custom_call.1} parent=1 // pred_region
      %52 = dma.done [#allocation3], 1792
    $region21: #{tpu_custom_call.1} parent=1 // pred_fallthru
      _
    // Predicated region
    $region22: #{tpu_custom_call.1} parent=1 // pred_check
      _
    $region23: #{tpu_custom_call.1} parent=1 // pred_check_branch
      %54 = sbr.rel (0) target = $region25
    $region24: #{tpu_custom_call.1} parent=1 // pred_region
      %55 = dma.done [#allocation6], 6272
    $region25: #{tpu_custom_call.1} parent=1 // pred_fallthru
      _
    // Predicated region
    $region26: #{tpu_custom_call.1} parent=1 // pred_check
      _
    $region27: #{tpu_custom_call.1} parent=1 // pred_check_branch
      %57 = sbr.rel (0) target = $region29
    $region28: #{tpu_custom_call.1} parent=1 // pred_region
      %58 = dma.done [#allocation6], 5120
    $region29: #{tpu_custom_call.1} parent=1 // pred_fallthru
      _
    %v60 = vld [vmem:[#allocation2] sm:$0xff]
    %v61 = vld [vmem:[#allocation2 + $0x8] sm:$0xff]
    %v62 = vld [vmem:[#allocation2 + $0x10] sm:$0xff]
    %v63 = vld [vmem:[#allocation2 + $0x18] sm:$0xff]
    %v64 = vld [vmem:[#allocation2 + $0x20] sm:$0xff]
    %v65 = vld [vmem:[#allocation2 + $0x28] sm:$0xff]
    %v66 = vld [vmem:[#allocation2 + $0x30] sm:$0xff]
    %v67 = vld [vmem:[#allocation2 + $0x38] sm:$0xff]
    %v68 = vld [vmem:[#allocation2 + $0x40] sm:$0xff]
    %v69 = vld [vmem:[#allocation2 + $0x48] sm:$0xff]
    %v70 = vld [vmem:[#allocation2 + $0x50] sm:$0xff]
    %v71 = vld [vmem:[#allocation2 + $0x58] sm:$0xff]
    %v72 = vld [vmem:[#allocation2 + $0x60] sm:$0xff]
    %v73 = vld [vmem:[#allocation2 + $0x68] sm:$0xff]
    %v74 = vpack.c.bf16 %v67, %v60
    %v75 = vpack.c.bf16 %v68, %v61
    %v76 = vpack.c.bf16 %v69, %v62
    %v77 = vpack.c.bf16 %v70, %v63
    %v78 = vpack.c.bf16 %v71, %v64
    %v79 = vpack.c.bf16 %v72, %v65
    %v80 = vpack.c.bf16 %v73, %v66
    %v81 = vld [vmem:[#allocation5] sm:$0xf]
    %v82 = vld [vmem:[#allocation5 + $0x4] sm:$0xf]
    %v83 = vld [vmem:[#allocation5 + $0x8] sm:$0xf]
    %v84 = vld [vmem:[#allocation5 + $0xc] sm:$0xf]
    %v85 = vld [vmem:[#allocation5 + $0x10] sm:$0xf]
    %v86 = vld [vmem:[#allocation5 + $0x14] sm:$0xf]
    %v87 = vld [vmem:[#allocation5 + $0x18] sm:$0xf]
    %v88 = vld [vmem:[#allocation5 + $0x1c] sm:$0xf]
    %v89 = vld [vmem:[#allocation5 + $0x20] sm:$0xf]
    %v90 = vld [vmem:[#allocation5 + $0x24] sm:$0xf]
    %v91 = vld [vmem:[#allocation5 + $0x28] sm:$0xf]
    %v92 = vld [vmem:[#allocation5 + $0x2c] sm:$0xf]
    %v93 = vld [vmem:[#allocation5 + $0x30] sm:$0xf]
    %v94 = vld [vmem:[#allocation5 + $0x34] sm:$0xf]
    %v95 = vld [vmem:[#allocation5 + $0x38] sm:$0xf]
    %v96 = vld [vmem:[#allocation5 + $0x3c] sm:$0xf]
    %v97 = vld [vmem:[#allocation5 + $0x40] sm:$0xf]
    %v98 = vld [vmem:[#allocation5 + $0x44] sm:$0xf]
    %v99 = vld [vmem:[#allocation5 + $0x48] sm:$0xf]
    %v100 = vld [vmem:[#allocation5 + $0x4c] sm:$0xf]
    %v101 = vld [vmem:[#allocation5 + $0x50] sm:$0xf]
    %v102 = vld [vmem:[#allocation5 + $0x54] sm:$0xf]
    %v103 = vld [vmem:[#allocation5 + $0x58] sm:$0xf]
    %v104 = vld [vmem:[#allocation5 + $0x5c] sm:$0xf]
    %v105 = vld [vmem:[#allocation5 + $0x60] sm:$0xf]
    %v106 = vld [vmem:[#allocation5 + $0x64] sm:$0xf]
    %v107 = vld [vmem:[#allocation5 + $0x68] sm:$0xf]
    %v108 = vld [vmem:[#allocation5 + $0x6c] sm:$0xf]
    %v109 = vld [vmem:[#allocation5 + $0x70] sm:$0xf]
    %v110 = vld [vmem:[#allocation5 + $0x74] sm:$0xf]
    %v111 = vld [vmem:[#allocation5 + $0x78] sm:$0xf]
    %v112 = vld [vmem:[#allocation5 + $0x7c] sm:$0xf]
    %v113 = vld [vmem:[#allocation5 + $0x80] sm:$0xf]
    %v114 = vld [vmem:[#allocation5 + $0x84] sm:$0xf]
    %v115 = vld [vmem:[#allocation5 + $0x88] sm:$0xf]
    %v116 = vld [vmem:[#allocation5 + $0x8c] sm:$0xf]
    %v117 = vld [vmem:[#allocation5 + $0x90] sm:$0xf]
    %v118 = vld [vmem:[#allocation5 + $0x94] sm:$0xf]
    %v119 = vld [vmem:[#allocation5 + $0x98] sm:$0xf]
    %v120 = vld [vmem:[#allocation5 + $0x9c] sm:$0xf]
    %v121 = vld [vmem:[#allocation5 + $0xa0] sm:$0xf]
    %v122 = vld [vmem:[#allocation5 + $0xa4] sm:$0xf]
    %v123 = vld [vmem:[#allocation5 + $0xa8] sm:$0xf]
    %v124 = vld [vmem:[#allocation5 + $0xac] sm:$0xf]
    %v125 = vld [vmem:[#allocation5 + $0xb0] sm:$0xf]
    %v126 = vld [vmem:[#allocation5 + $0xb4] sm:$0xf]
    %v127 = vld [vmem:[#allocation5 + $0xb8] sm:$0xf]
    %v128 = vld [vmem:[#allocation5 + $0xbc] sm:$0xf]
    %v129 = vld [vmem:[#allocation5 + $0xc0] sm:$0xf]
    %v130 = vld [vmem:[#allocation5 + $0xc4] sm:$0xf]
    %v131 = vld [vmem:[#allocation5 + $0xc8] sm:$0xf]
    %v132 = vld [vmem:[#allocation5 + $0xcc] sm:$0xf]
    %v133 = vld [vmem:[#allocation5 + $0xd0] sm:$0xf]
    %v134 = vld [vmem:[#allocation5 + $0xd4] sm:$0xf]
    %v135 = vld [vmem:[#allocation5 + $0xd8] sm:$0xf]
    %v136 = vld [vmem:[#allocation5 + $0xdc] sm:$0xf]
    %v137 = vld [vmem:[#allocation5 + $0xe0] sm:$0xf]
    %v138 = vld [vmem:[#allocation5 + $0xe4] sm:$0xf]
    %v139 = vld [vmem:[#allocation5 + $0xe8] sm:$0xf]
    %v140 = vld [vmem:[#allocation5 + $0xec] sm:$0xf]
    %v141 = vld [vmem:[#allocation5 + $0xf0] sm:$0xf]
    %v142 = vld [vmem:[#allocation5 + $0xf4] sm:$0xf]
    %v143 = vld [vmem:[#allocation5 + $0xf8] sm:$0xf]
    %v144 = vld [vmem:[#allocation5 + $0xfc] sm:$0xf]
    %v145 = vld [vmem:[#allocation5 + $0x100] sm:$0xf]
    %v146 = vld [vmem:[#allocation5 + $0x104] sm:$0xf]
    %v147 = vld [vmem:[#allocation5 + $0x108] sm:$0xf]
    %v148 = vld [vmem:[#allocation5 + $0x10c] sm:$0xf]
    %v149 = vld [vmem:[#allocation5 + $0x110] sm:$0xf]
    %v150 = vld [vmem:[#allocation5 + $0x114] sm:$0xf]
    %v151 = vld [vmem:[#allocation5 + $0x118] sm:$0xf]
    %v152 = vld [vmem:[#allocation5 + $0x11c] sm:$0xf]
    %v153 = vld [vmem:[#allocation5 + $0x120] sm:$0xf]
    %v154 = vld [vmem:[#allocation5 + $0x124] sm:$0xf]
    %v155 = vld [vmem:[#allocation5 + $0x128] sm:$0xf]
    %v156 = vld [vmem:[#allocation5 + $0x12c] sm:$0xf]
    %v157 = vld [vmem:[#allocation5 + $0x130] sm:$0xf]
    %v158 = vld [vmem:[#allocation5 + $0x134] sm:$0xf]
    %v159 = vld [vmem:[#allocation5 + $0x138] sm:$0xf]
    %v160 = vld [vmem:[#allocation5 + $0x13c] sm:$0xf]
    %v161 = vld [vmem:[#allocation5 + $0x140] sm:$0xf]
    %v162 = vld [vmem:[#allocation5 + $0x144] sm:$0xf]
    %v163 = vld [vmem:[#allocation5 + $0x148] sm:$0xf]
    %v164 = vld [vmem:[#allocation5 + $0x14c] sm:$0xf]
    %v165 = vld [vmem:[#allocation5 + $0x150] sm:$0xf]
    %v166 = vld [vmem:[#allocation5 + $0x154] sm:$0xf]
    %v167 = vld [vmem:[#allocation5 + $0x158] sm:$0xf]
    %v168 = vld [vmem:[#allocation5 + $0x15c] sm:$0xf]
    %v169 = vld [vmem:[#allocation5 + $0x160] sm:$0xf]
    %v170 = vld [vmem:[#allocation5 + $0x164] sm:$0xf]
    %v171 = vld [vmem:[#allocation5 + $0x168] sm:$0xf]
    %v172 = vld [vmem:[#allocation5 + $0x16c] sm:$0xf]
    %v173 = vld [vmem:[#allocation5 + $0x170] sm:$0xf]
    %v174 = vld [vmem:[#allocation5 + $0x174] sm:$0xf]
    %v175 = vld [vmem:[#allocation5 + $0x178] sm:$0xf]
    %v176 = vld [vmem:[#allocation5 + $0x17c] sm:$0xf]
    %v177 = vld [vmem:[#allocation5 + $0x180] sm:$0xf]
    %v178 = vld [vmem:[#allocation5 + $0x184] sm:$0xf]
    %v179 = vld [vmem:[%s3] sm:$0x1]
    %v180 = vlaneseq
    %v181 = vshrl.u32 %v180, 7
    %v182 = vsub.s32 0, %v181
    %v183 = vrot.slane %v179, %v182
    %v282 = vunpack.c.l.b16 %v81
    %v283 = vunpack.c.l.b16 %v82
    %v284 = vunpack.c.l.b16 %v83
    %v285 = vunpack.c.l.b16 %v84
    %v286 = vunpack.c.l.b16 %v85
    %v287 = vunpack.c.l.b16 %v86
    %v288 = vunpack.c.l.b16 %v87
    %v289 = vunpack.c.l.b16 %v88
    %v290 = vunpack.c.l.b16 %v89
    %v291 = vunpack.c.l.b16 %v90
    %v292 = vunpack.c.l.b16 %v91
    %v293 = vunpack.c.l.b16 %v92
    %v294 = vunpack.c.l.b16 %v93
    %v295 = vunpack.c.l.b16 %v94
    %v296 = vunpack.c.l.b16 %v95
    %v297 = vunpack.c.l.b16 %v96
    %v298 = vunpack.c.l.b16 %v97
    %v299 = vunpack.c.l.b16 %v98
    %v300 = vunpack.c.l.b16 %v99
    %v301 = vunpack.c.l.b16 %v100
    %v302 = vunpack.c.l.b16 %v101
    %v303 = vunpack.c.l.b16 %v102
    %v304 = vunpack.c.l.b16 %v103
    %v305 = vunpack.c.l.b16 %v104
    %v306 = vunpack.c.l.b16 %v105
    %v307 = vunpack.c.l.b16 %v106
    %v308 = vunpack.c.l.b16 %v107
    %v309 = vunpack.c.l.b16 %v108
    %v310 = vunpack.c.l.b16 %v109
    %v311 = vunpack.c.l.b16 %v110
    %v312 = vunpack.c.l.b16 %v111
    %v313 = vunpack.c.l.b16 %v112
    %v314 = vunpack.c.l.b16 %v113
    %v315 = vunpack.c.l.b16 %v114
    %v316 = vunpack.c.l.b16 %v115
    %v317 = vunpack.c.l.b16 %v116
    %v318 = vunpack.c.l.b16 %v117
    %v319 = vunpack.c.l.b16 %v118
    %v320 = vunpack.c.l.b16 %v119
    %v321 = vunpack.c.l.b16 %v120
    %v322 = vunpack.c.l.b16 %v121
    %v323 = vunpack.c.l.b16 %v122
    %v324 = vunpack.c.l.b16 %v123
    %v325 = vunpack.c.l.b16 %v124
    %v326 = vunpack.c.l.b16 %v125
    %v327 = vunpack.c.l.b16 %v126
    %v328 = vunpack.c.l.b16 %v127
    %v329 = vunpack.c.l.b16 %v128
    %v330 = vunpack.c.l.b16 %v129
    %v331 = vunpack.c.l.b16 %v130
    %v332 = vunpack.c.l.b16 %v131
    %v333 = vunpack.c.l.b16 %v132
    %v334 = vunpack.c.l.b16 %v133
    %v335 = vunpack.c.l.b16 %v134
    %v336 = vunpack.c.l.b16 %v135
    %v337 = vunpack.c.l.b16 %v136
    %v338 = vunpack.c.l.b16 %v137
    %v339 = vunpack.c.l.b16 %v138
    %v340 = vunpack.c.l.b16 %v139
    %v341 = vunpack.c.l.b16 %v140
    %v342 = vunpack.c.l.b16 %v141
    %v343 = vunpack.c.l.b16 %v142
    %v344 = vunpack.c.l.b16 %v143
    %v345 = vunpack.c.l.b16 %v144
    %v346 = vunpack.c.l.b16 %v145
    %v347 = vunpack.c.l.b16 %v146
    %v348 = vunpack.c.l.b16 %v147
    %v349 = vunpack.c.l.b16 %v148
    %v350 = vunpack.c.l.b16 %v149
    %v351 = vunpack.c.l.b16 %v150
    %v352 = vunpack.c.l.b16 %v151
    %v353 = vunpack.c.l.b16 %v152
    %v354 = vunpack.c.l.b16 %v153
    %v355 = vunpack.c.l.b16 %v154
    %v356 = vunpack.c.l.b16 %v155
    %v357 = vunpack.c.l.b16 %v156
    %v358 = vunpack.c.l.b16 %v157
    %v359 = vunpack.c.l.b16 %v158
    %v360 = vunpack.c.l.b16 %v159
    %v361 = vunpack.c.l.b16 %v160
    %v362 = vunpack.c.l.b16 %v161
    %v363 = vunpack.c.l.b16 %v162
    %v364 = vunpack.c.l.b16 %v163
    %v365 = vunpack.c.l.b16 %v164
    %v366 = vunpack.c.l.b16 %v165
    %v367 = vunpack.c.l.b16 %v166
    %v368 = vunpack.c.l.b16 %v167
    %v369 = vunpack.c.l.b16 %v168
    %v370 = vunpack.c.l.b16 %v169
    %v371 = vunpack.c.l.b16 %v170
    %v372 = vunpack.c.l.b16 %v171
    %v373 = vunpack.c.l.b16 %v172
    %v374 = vunpack.c.l.b16 %v173
    %v375 = vunpack.c.l.b16 %v174
    %v376 = vunpack.c.l.b16 %v175
    %v377 = vunpack.c.l.b16 %v176
    %v378 = vunpack.c.l.b16 %v177
    %v379 = vunpack.c.l.b16 %v178
    %v380 = vpack.c.b16 %v283, %v282
    %v381 = vpack.c.b16 %v285, %v284
    %v382 = vpack.c.b16 %v287, %v286
    %v383 = vpack.c.b16 %v289, %v288
    %v384 = vpack.c.b16 %v291, %v290
    %v385 = vpack.c.b16 %v293, %v292
    %v386 = vpack.c.b16 %v295, %v294
    %v387 = vpack.c.b16 %v297, %v296
    %v388 = vpack.c.b16 %v299, %v298
    %v389 = vpack.c.b16 %v301, %v300
    %v390 = vpack.c.b16 %v303, %v302
    %v391 = vpack.c.b16 %v305, %v304
    %v392 = vpack.c.b16 %v307, %v306
    %v393 = vpack.c.b16 %v309, %v308
    %v394 = vpack.c.b16 %v311, %v310
    %v395 = vpack.c.b16 %v313, %v312
    %v396 = vpack.c.b16 %v315, %v314
    %v397 = vpack.c.b16 %v317, %v316
    %v398 = vpack.c.b16 %v319, %v318
    %v399 = vpack.c.b16 %v321, %v320
    %v400 = vpack.c.b16 %v323, %v322
    %v401 = vpack.c.b16 %v325, %v324
    %v402 = vpack.c.b16 %v327, %v326
    %v403 = vpack.c.b16 %v329, %v328
    %v404 = vpack.c.b16 %v331, %v330
    %v405 = vpack.c.b16 %v333, %v332
    %v406 = vpack.c.b16 %v335, %v334
    %v407 = vpack.c.b16 %v337, %v336
    %v408 = vpack.c.b16 %v339, %v338
    %v409 = vpack.c.b16 %v341, %v340
    %v410 = vpack.c.b16 %v343, %v342
    %v411 = vpack.c.b16 %v345, %v344
    %v412 = vpack.c.b16 %v347, %v346
    %v413 = vpack.c.b16 %v349, %v348
    %v414 = vpack.c.b16 %v351, %v350
    %v415 = vpack.c.b16 %v353, %v352
    %v416 = vpack.c.b16 %v355, %v354
    %v417 = vpack.c.b16 %v357, %v356
    %v418 = vpack.c.b16 %v359, %v358
    %v419 = vpack.c.b16 %v361, %v360
    %v420 = vpack.c.b16 %v363, %v362
    %v421 = vpack.c.b16 %v365, %v364
    %v422 = vpack.c.b16 %v367, %v366
    %v423 = vpack.c.b16 %v369, %v368
    %v424 = vpack.c.b16 %v371, %v370
    %v425 = vpack.c.b16 %v373, %v372
    %v426 = vpack.c.b16 %v375, %v374
    %v427 = vpack.c.b16 %v377, %v376
    %v428 = vpack.c.b16 %v379, %v378
    %vm478 = vcmask 130048
    %v480 = vsel %vm478, %v80, 0
    %482 = vmatprep.subr.bf16.mxu0 0
    %483 = vmatpush1.bf16.msra.mxu0 %v380
    %484 = vmatprep.subr.bf16.mxu0 0
    %485 = vmatpush1.bf16.msra.mxu0 %v381
    %486 = vmatprep.subr.bf16.mxu0 0
    %487 = vmatpush1.bf16.msra.mxu0 %v382
    %488 = vmatprep.subr.bf16.mxu0 0
    %489 = vmatpush1.bf16.msra.mxu0 %v383
    %490 = vmatprep.subr.bf16.mxu0 0
    %491 = vmatpush1.bf16.msra.mxu0 %v384
    %492 = vmatprep.subr.bf16.mxu0 0
    %493 = vmatpush1.bf16.msra.mxu0 %v385
    %494 = vmatprep.subr.bf16.mxu0 0
    %495 = vmatpush1.bf16.msra.mxu0 %v386
    %496 = vmatprep.subr.bf16.mxu0 0
    %497 = vmatpush1.bf16.msra.mxu0 %v387
    %498 = vmatprep.subr.bf16.mxu0 0
    %499 = vmatpush1.bf16.msra.mxu0 %v388
    %500 = vmatprep.subr.bf16.mxu0 0
    %501 = vmatpush1.bf16.msra.mxu0 %v389
    %502 = vmatprep.subr.bf16.mxu0 0
    %503 = vmatpush1.bf16.msra.mxu0 %v390
    %504 = vmatprep.subr.bf16.mxu0 0
    %505 = vmatpush1.bf16.msra.mxu0 %v391
    %506 = vmatprep.subr.bf16.mxu0 0
    %507 = vmatpush1.bf16.msra.mxu0 %v392
    %508 = vmatprep.subr.bf16.mxu0 0
    %509 = vmatpush1.bf16.msra.mxu0 %v393
    %510 = vmatprep.subr.bf16.mxu0 0
    %511 = vmatpush1.bf16.msra.mxu0 %v394
    %512 = vmatprep.subr.bf16.mxu0 0
    %513 = vmatpush1.bf16.msra.mxu0 %v395
    %514 = vmatprep.mubr.bf16.mxu0 %v75
    %515 = vmatmul.mubr.bf16.gmra.mrb[0].mxu0 %v74
    %v516 = vpop.f32.mrb[0].mxu0
    %v517 = vadd.f32 %v183, %v516
    %v518 = vpop.f32.mrb[0].mxu0
    %v519 = vpop.f32.mrb[0].mxu0
    %v520 = vadd.f32 %v183, %v519
    %v521 = vpop.f32.mrb[0].mxu0
    %522 = vdwg.mxu0
    %523 = vmatprep.subr.bf16.mxu0 0
    %524 = vmatpush1.bf16.msra.mxu0 %v396
    %525 = vmatprep.subr.bf16.mxu0 0
    %526 = vmatpush1.bf16.msra.mxu0 %v397
    %527 = vmatprep.subr.bf16.mxu0 0
    %528 = vmatpush1.bf16.msra.mxu0 %v398
    %529 = vmatprep.subr.bf16.mxu0 0
    %530 = vmatpush1.bf16.msra.mxu0 %v399
    %531 = vmatprep.subr.bf16.mxu0 0
    %532 = vmatpush1.bf16.msra.mxu0 %v400
    %533 = vmatprep.subr.bf16.mxu0 0
    %534 = vmatpush1.bf16.msra.mxu0 %v401
    %535 = vmatprep.subr.bf16.mxu0 0
    %536 = vmatpush1.bf16.msra.mxu0 %v402
    %537 = vmatprep.subr.bf16.mxu0 0
    %538 = vmatpush1.bf16.msra.mxu0 %v403
    %539 = vmatprep.subr.bf16.mxu0 0
    %540 = vmatpush1.bf16.msra.mxu0 %v404
    %541 = vmatprep.subr.bf16.mxu0 0
    %542 = vmatpush1.bf16.msra.mxu0 %v405
    %543 = vmatprep.subr.bf16.mxu0 0
    %544 = vmatpush1.bf16.msra.mxu0 %v406
    %545 = vmatprep.subr.bf16.mxu0 0
    %546 = vmatpush1.bf16.msra.mxu0 %v407
    %547 = vmatprep.subr.bf16.mxu0 0
    %548 = vmatpush1.bf16.msra.mxu0 %v408
    %549 = vmatprep.subr.bf16.mxu0 0
    %550 = vmatpush1.bf16.msra.mxu0 %v409
    %551 = vmatprep.subr.bf16.mxu0 0
    %552 = vmatpush1.bf16.msra.mxu0 %v410
    %553 = vmatprep.subr.bf16.mxu0 0
    %554 = vmatpush1.bf16.msra.mxu0 %v411
    %555 = vmatprep.mubr.bf16.mxu0 %v77
    %556 = vmatmul.mubr.bf16.gmra.mrb[0].mxu0 %v76
    %v557 = vpop.f32.mrb[0].mxu0
    %v558 = vadd.f32 %v517, %v557
    %v559 = vpop.f32.mrb[0].mxu0
    %v560 = vpop.f32.mrb[0].mxu0
    %v561 = vadd.f32 %v520, %v560
    %v562 = vpop.f32.mrb[0].mxu0
    %563 = vdwg.mxu0
    %564 = vmatprep.subr.bf16.mxu0 0
    %565 = vmatpush1.bf16.msra.mxu0 %v412
    %566 = vmatprep.subr.bf16.mxu0 0
    %567 = vmatpush1.bf16.msra.mxu0 %v413
    %568 = vmatprep.subr.bf16.mxu0 0
    %569 = vmatpush1.bf16.msra.mxu0 %v414
    %570 = vmatprep.subr.bf16.mxu0 0
    %571 = vmatpush1.bf16.msra.mxu0 %v415
    %572 = vmatprep.subr.bf16.mxu0 0
    %573 = vmatpush1.bf16.msra.mxu0 %v416
    %574 = vmatprep.subr.bf16.mxu0 0
    %575 = vmatpush1.bf16.msra.mxu0 %v417
    %576 = vmatprep.subr.bf16.mxu0 0
    %577 = vmatpush1.bf16.msra.mxu0 %v418
    %578 = vmatprep.subr.bf16.mxu0 0
    %579 = vmatpush1.bf16.msra.mxu0 %v419
    %580 = vmatprep.subr.bf16.mxu0 0
    %581 = vmatpush1.bf16.msra.mxu0 %v420
    %582 = vmatprep.subr.bf16.mxu0 0
    %583 = vmatpush1.bf16.msra.mxu0 %v421
    %584 = vmatprep.subr.bf16.mxu0 0
    %585 = vmatpush1.bf16.msra.mxu0 %v422
    %586 = vmatprep.subr.bf16.mxu0 0
    %587 = vmatpush1.bf16.msra.mxu0 %v423
    %588 = vmatprep.subr.bf16.mxu0 0
    %589 = vmatpush1.bf16.msra.mxu0 %v424
    %590 = vmatprep.subr.bf16.mxu0 0
    %591 = vmatpush1.bf16.msra.mxu0 %v425
    %592 = vmatprep.subr.bf16.mxu0 0
    %593 = vmatpush1.bf16.msra.mxu0 %v426
    %594 = vmatprep.subr.bf16.mxu0 0
    %595 = vmatpush1.bf16.msra.mxu0 %v427
    %596 = vmatprep.mubr.bf16.mxu0 %v79
    %597 = vmatmul.mubr.bf16.gmra.mrb[0].mxu0 %v78
    %v598 = vpop.f32.mrb[0].mxu0
    %v599 = vadd.f32 %v558, %v598
    %v600 = vpop.f32.mrb[0].mxu0
    %v601 = vpop.f32.mrb[0].mxu0
    %v602 = vadd.f32 %v561, %v601
    %v603 = vpop.f32.mrb[0].mxu0
    %604 = vdwg.mxu0
    %605 = vmatprep.subr.bf16.mxu0 0
    %606 = vmatpush1.bf16.msra.mxu0 %v428
    %607 = vmatprep.subr.bf16.mxu0 0
    %608 = vmatpush1.bf16.msra.mxu0 0
    %609 = vmatprep.subr.bf16.mxu0 0
    %610 = vmatpush1.bf16.msra.mxu0 0
    %611 = vmatprep.subr.bf16.mxu0 0
    %612 = vmatpush1.bf16.msra.mxu0 0
    %613 = vmatprep.subr.bf16.mxu0 0
    %614 = vmatpush1.bf16.msra.mxu0 0
    %615 = vmatprep.subr.bf16.mxu0 0
    %616 = vmatpush1.bf16.msra.mxu0 0
    %617 = vmatprep.subr.bf16.mxu0 0
    %618 = vmatpush1.bf16.msra.mxu0 0
    %619 = vmatprep.subr.bf16.mxu0 0
    %620 = vmatpush1.bf16.msra.mxu0 0
    %621 = vmatprep.subr.bf16.mxu0 0
    %622 = vmatpush1.bf16.msra.mxu0 0
    %623 = vmatprep.subr.bf16.mxu0 0
    %624 = vmatpush1.bf16.msra.mxu0 0
    %625 = vmatprep.subr.bf16.mxu0 0
    %626 = vmatpush1.bf16.msra.mxu0 0
    %627 = vmatprep.subr.bf16.mxu0 0
    %628 = vmatpush1.bf16.msra.mxu0 0
    %629 = vmatprep.subr.bf16.mxu0 0
    %630 = vmatpush1.bf16.msra.mxu0 0
    %631 = vmatprep.subr.bf16.mxu0 0
    %632 = vmatpush1.bf16.msra.mxu0 0
    %633 = vmatprep.subr.bf16.mxu0 0
    %634 = vmatpush1.bf16.msra.mxu0 0
    %635 = vmatprep.subr.bf16.mxu0 0
    %636 = vmatpush1.bf16.msra.mxu0 0
    %637 = vmatprep.mubr.bf16.mxu0 0
    %638 = vmatmul.mubr.bf16.gmra.mrb[0].mxu0 %v480
    %v639 = vpop.f32.mrb[0].mxu0
    %v640 = vadd.f32 %v599, %v639
    %v641 = vpop.f32.mrb[0].mxu0
    %v642 = vpop.f32.mrb[0].mxu0
    %v643 = vadd.f32 %v602, %v642
    %v644 = vpop.f32.mrb[0].mxu0
    %645 = vdwg.mxu0
    %v646 = vmax.f32 %v640, 0.0
    %v647 = vmax.f32 %v643, 0.0
    %v648 = vpack.c.bf16 %v647, %v646
    %v649 = vld [vmem:[#allocation7] sm:$0xf]
    %v650 = vld [vmem:[#allocation7 + $0x4] sm:$0xf]
    %v651 = vld [vmem:[#allocation7 + $0x8] sm:$0xf]
    %v652 = vld [vmem:[#allocation7 + $0xc] sm:$0xf]
    %v653 = vld [vmem:[#allocation7 + $0x10] sm:$0xf]
    %v654 = vld [vmem:[#allocation7 + $0x14] sm:$0xf]
    %v655 = vld [vmem:[#allocation7 + $0x18] sm:$0xf]
    %v656 = vld [vmem:[#allocation7 + $0x1c] sm:$0xf]
    %v657 = vld [vmem:[#allocation7 + $0x20] sm:$0xf]
    %v658 = vld [vmem:[#allocation7 + $0x24] sm:$0xf]
    %v659 = vld [vmem:[#allocation7 + $0x28] sm:$0xf]
    %v660 = vld [vmem:[#allocation7 + $0x2c] sm:$0xf]
    %v661 = vld [vmem:[#allocation7 + $0x30] sm:$0xf]
    %v662 = vld [vmem:[#allocation7 + $0x34] sm:$0xf]
    %v663 = vld [vmem:[#allocation7 + $0x38] sm:$0xf]
    %v664 = vld [vmem:[#allocation7 + $0x3c] sm:$0xf]
    %v665 = vld [vmem:[%s3 + $0x1] sm:$0x1]
    %v666 = vlaneseq
    %v667 = vshrl.u32 %v666, 7
    %v668 = vsub.s32 0, %v667
    %v669 = vrot.slane %v665, %v668
    %v686 = vunpack.c.l.b16 %v649
    %v687 = vunpack.c.l.b16 %v650
    %v688 = vunpack.c.l.b16 %v651
    %v689 = vunpack.c.l.b16 %v652
    %v690 = vunpack.c.l.b16 %v653
    %v691 = vunpack.c.l.b16 %v654
    %v692 = vunpack.c.l.b16 %v655
    %v693 = vunpack.c.l.b16 %v656
    %v694 = vunpack.c.l.b16 %v657
    %v695 = vunpack.c.l.b16 %v658
    %v696 = vunpack.c.l.b16 %v659
    %v697 = vunpack.c.l.b16 %v660
    %v698 = vunpack.c.l.b16 %v661
    %v699 = vunpack.c.l.b16 %v662
    %v700 = vunpack.c.l.b16 %v663
    %v701 = vunpack.c.l.b16 %v664
    %v702 = vpack.c.b16 %v687, %v686
    %v703 = vpack.c.b16 %v689, %v688
    %v704 = vpack.c.b16 %v691, %v690
    %v705 = vpack.c.b16 %v693, %v692
    %v706 = vpack.c.b16 %v695, %v694
    %v707 = vpack.c.b16 %v697, %v696
    %v708 = vpack.c.b16 %v699, %v698
    %v709 = vpack.c.b16 %v701, %v700
    %718 = vmatprep.subr.bf16.mxu0 0
    %719 = vmatpush1.bf16.msra.mxu0 %v702
    %720 = vmatprep.subr.bf16.mxu0 0
    %721 = vmatpush1.bf16.msra.mxu0 %v703
    %722 = vmatprep.subr.bf16.mxu0 0
    %723 = vmatpush1.bf16.msra.mxu0 %v704
    %724 = vmatprep.subr.bf16.mxu0 0
    %725 = vmatpush1.bf16.msra.mxu0 %v705
    %726 = vmatprep.subr.bf16.mxu0 0
    %727 = vmatpush1.bf16.msra.mxu0 %v706
    %728 = vmatprep.subr.bf16.mxu0 0
    %729 = vmatpush1.bf16.msra.mxu0 %v707
    %730 = vmatprep.subr.bf16.mxu0 0
    %731 = vmatpush1.bf16.msra.mxu0 %v708
    %732 = vmatprep.subr.bf16.mxu0 0
    %733 = vmatpush1.bf16.msra.mxu0 %v709
    %734 = vmatprep.subr.bf16.mxu0 0
    %735 = vmatpush1.bf16.msra.mxu0 0
    %736 = vmatprep.subr.bf16.mxu0 0
    %737 = vmatpush1.bf16.msra.mxu0 0
    %738 = vmatprep.subr.bf16.mxu0 0
    %739 = vmatpush1.bf16.msra.mxu0 0
    %740 = vmatprep.subr.bf16.mxu0 0
    %741 = vmatpush1.bf16.msra.mxu0 0
    %742 = vmatprep.subr.bf16.mxu0 0
    %743 = vmatpush1.bf16.msra.mxu0 0
    %744 = vmatprep.subr.bf16.mxu0 0
    %745 = vmatpush1.bf16.msra.mxu0 0
    %746 = vmatprep.subr.bf16.mxu0 0
    %747 = vmatpush1.bf16.msra.mxu0 0
    %748 = vmatprep.subr.bf16.mxu0 0
    %749 = vmatpush1.bf16.msra.mxu0 0
    %750 = vmatprep.mubr.bf16.mxu0 0
    %751 = vmatmul.mubr.bf16.gmra.mrb[0].mxu0 %v648
    %v752 = vpop.f32.mrb[0].mxu0
    %v753 = vadd.f32 %v669, %v752
    %v754 = vpop.f32.mrb[0].mxu0
    %v755 = vpop.f32.mrb[0].mxu0
    %v756 = vadd.f32 %v669, %v755
    %v757 = vpop.f32.mrb[0].mxu0
    %758 = vdwg.mxu0
    %v759 = vmax.f32 %v753, 0.0
    %v760 = vmax.f32 %v756, 0.0
    %v761 = vpack.c.bf16 %v760, %v759
    %s762 = scalar_lea.vmem [#allocation7], 64
    %v763 = vld [vmem:[%s762] sm:$0xf]
    %v764 = vld [vmem:[%s762 + $0x4] sm:$0xf]
    %v765 = vld [vmem:[%s762 + $0x8] sm:$0xf]
    %v766 = vld [vmem:[%s762 + $0xc] sm:$0xf]
    %v767 = vld [vmem:[%s762 + $0x10] sm:$0xf]
    %v768 = vld [vmem:[%s762 + $0x14] sm:$0xf]
    %v769 = vld [vmem:[%s762 + $0x18] sm:$0xf]
    %v770 = vld [vmem:[%s762 + $0x1c] sm:$0xf]
    %v771 = vld [vmem:[%s762 + $0x20] sm:$0xf]
    %v772 = vld [vmem:[%s762 + $0x24] sm:$0xf]
    %v773 = vld [vmem:[%s762 + $0x28] sm:$0xf]
    %v774 = vld [vmem:[%s762 + $0x2c] sm:$0xf]
    %v775 = vld [vmem:[%s762 + $0x30] sm:$0xf]
    %v776 = vld [vmem:[%s762 + $0x34] sm:$0xf]
    %v777 = vld [vmem:[%s762 + $0x38] sm:$0xf]
    %v778 = vld [vmem:[%s762 + $0x3c] sm:$0xf]
    %v779 = vld [vmem:[%s3 + $0x2] sm:$0x1]
    %v780 = vlaneseq
    %v781 = vshrl.u32 %v780, 7
    %v782 = vsub.s32 0, %v781
    %v783 = vrot.slane %v779, %v782
    %v800 = vunpack.c.l.b16 %v763
    %v801 = vunpack.c.l.b16 %v764
    %v802 = vunpack.c.l.b16 %v765
    %v803 = vunpack.c.l.b16 %v766
    %v804 = vunpack.c.l.b16 %v767
    %v805 = vunpack.c.l.b16 %v768
    %v806 = vunpack.c.l.b16 %v769
    %v807 = vunpack.c.l.b16 %v770
    %v808 = vunpack.c.l.b16 %v771
    %v809 = vunpack.c.l.b16 %v772
    %v810 = vunpack.c.l.b16 %v773
    %v811 = vunpack.c.l.b16 %v774
    %v812 = vunpack.c.l.b16 %v775
    %v813 = vunpack.c.l.b16 %v776
    %v814 = vunpack.c.l.b16 %v777
    %v815 = vunpack.c.l.b16 %v778
    %v816 = vpack.c.b16 %v801, %v800
    %v817 = vpack.c.b16 %v803, %v802
    %v818 = vpack.c.b16 %v805, %v804
    %v819 = vpack.c.b16 %v807, %v806
    %v820 = vpack.c.b16 %v809, %v808
    %v821 = vpack.c.b16 %v811, %v810
    %v822 = vpack.c.b16 %v813, %v812
    %v823 = vpack.c.b16 %v815, %v814
    %832 = vmatprep.subr.bf16.mxu0 0
    %833 = vmatpush1.bf16.msra.mxu0 %v816
    %834 = vmatprep.subr.bf16.mxu0 0
    %835 = vmatpush1.bf16.msra.mxu0 %v817
    %836 = vmatprep.subr.bf16.mxu0 0
    %837 = vmatpush1.bf16.msra.mxu0 %v818
    %838 = vmatprep.subr.bf16.mxu0 0
    %839 = vmatpush1.bf16.msra.mxu0 %v819
    %840 = vmatprep.subr.bf16.mxu0 0
    %841 = vmatpush1.bf16.msra.mxu0 %v820
    %842 = vmatprep.subr.bf16.mxu0 0
    %843 = vmatpush1.bf16.msra.mxu0 %v821
    %844 = vmatprep.subr.bf16.mxu0 0
    %845 = vmatpush1.bf16.msra.mxu0 %v822
    %846 = vmatprep.subr.bf16.mxu0 0
    %847 = vmatpush1.bf16.msra.mxu0 %v823
    %848 = vmatprep.subr.bf16.mxu0 0
    %849 = vmatpush1.bf16.msra.mxu0 0
    %850 = vmatprep.subr.bf16.mxu0 0
    %851 = vmatpush1.bf16.msra.mxu0 0
    %852 = vmatprep.subr.bf16.mxu0 0
    %853 = vmatpush1.bf16.msra.mxu0 0
    %854 = vmatprep.subr.bf16.mxu0 0
    %855 = vmatpush1.bf16.msra.mxu0 0
    %856 = vmatprep.subr.bf16.mxu0 0
    %857 = vmatpush1.bf16.msra.mxu0 0
    %858 = vmatprep.subr.bf16.mxu0 0
    %859 = vmatpush1.bf16.msra.mxu0 0
    %860 = vmatprep.subr.bf16.mxu0 0
    %861 = vmatpush1.bf16.msra.mxu0 0
    %862 = vmatprep.subr.bf16.mxu0 0
    %863 = vmatpush1.bf16.msra.mxu0 0
    %864 = vmatprep.mubr.bf16.mxu0 0
    %865 = vmatmul.mubr.bf16.gmra.mrb[0].mxu0 %v761
    %v866 = vpop.f32.mrb[0].mxu0
    %v867 = vadd.f32 %v783, %v866
    %v868 = vpop.f32.mrb[0].mxu0
    %v869 = vpop.f32.mrb[0].mxu0
    %v870 = vadd.f32 %v783, %v869
    %v871 = vpop.f32.mrb[0].mxu0
    %872 = vdwg.mxu0
    %v873 = vmax.f32 %v867, 0.0
    %v874 = vmax.f32 %v870, 0.0
    %v875 = vpack.c.bf16 %v874, %v873
    %s876 = scalar_lea.vmem [#allocation7], 128
    %v877 = vld [vmem:[%s876] sm:$0xf]
    %v878 = vld [vmem:[%s876 + $0x4] sm:$0xf]
    %v879 = vld [vmem:[%s876 + $0x8] sm:$0xf]
    %v880 = vld [vmem:[%s876 + $0xc] sm:$0xf]
    %v881 = vld [vmem:[%s876 + $0x10] sm:$0xf]
    %v882 = vld [vmem:[%s876 + $0x14] sm:$0xf]
    %v883 = vld [vmem:[%s876 + $0x18] sm:$0xf]
    %v884 = vld [vmem:[%s876 + $0x1c] sm:$0xf]
    %v885 = vld [vmem:[%s876 + $0x20] sm:$0xf]
    %v886 = vld [vmem:[%s876 + $0x24] sm:$0xf]
    %v887 = vld [vmem:[%s876 + $0x28] sm:$0xf]
    %v888 = vld [vmem:[%s876 + $0x2c] sm:$0xf]
    %v889 = vld [vmem:[%s876 + $0x30] sm:$0xf]
    %v890 = vld [vmem:[%s876 + $0x34] sm:$0xf]
    %v891 = vld [vmem:[%s876 + $0x38] sm:$0xf]
    %v892 = vld [vmem:[%s876 + $0x3c] sm:$0xf]
    %v893 = vld [vmem:[%s3 + $0x3] sm:$0x1]
    %v894 = vlaneseq
    %v895 = vshrl.u32 %v894, 7
    %v896 = vsub.s32 0, %v895
    %v897 = vrot.slane %v893, %v896
    %v914 = vunpack.c.l.b16 %v877
    %v915 = vunpack.c.l.b16 %v878
    %v916 = vunpack.c.l.b16 %v879
    %v917 = vunpack.c.l.b16 %v880
    %v918 = vunpack.c.l.b16 %v881
    %v919 = vunpack.c.l.b16 %v882
    %v920 = vunpack.c.l.b16 %v883
    %v921 = vunpack.c.l.b16 %v884
    %v922 = vunpack.c.l.b16 %v885
    %v923 = vunpack.c.l.b16 %v886
    %v924 = vunpack.c.l.b16 %v887
    %v925 = vunpack.c.l.b16 %v888
    %v926 = vunpack.c.l.b16 %v889
    %v927 = vunpack.c.l.b16 %v890
    %v928 = vunpack.c.l.b16 %v891
    %v929 = vunpack.c.l.b16 %v892
    %v930 = vpack.c.b16 %v915, %v914
    %v931 = vpack.c.b16 %v917, %v916
    %v932 = vpack.c.b16 %v919, %v918
    %v933 = vpack.c.b16 %v921, %v920
    %v934 = vpack.c.b16 %v923, %v922
    %v935 = vpack.c.b16 %v925, %v924
    %v936 = vpack.c.b16 %v927, %v926
    %v937 = vpack.c.b16 %v929, %v928
    %946 = vmatprep.subr.bf16.mxu0 0
    %947 = vmatpush1.bf16.msra.mxu0 %v930
    %948 = vmatprep.subr.bf16.mxu0 0
    %949 = vmatpush1.bf16.msra.mxu0 %v931
    %950 = vmatprep.subr.bf16.mxu0 0
    %951 = vmatpush1.bf16.msra.mxu0 %v932
    %952 = vmatprep.subr.bf16.mxu0 0
    %953 = vmatpush1.bf16.msra.mxu0 %v933
    %954 = vmatprep.subr.bf16.mxu0 0
    %955 = vmatpush1.bf16.msra.mxu0 %v934
    %956 = vmatprep.subr.bf16.mxu0 0
    %957 = vmatpush1.bf16.msra.mxu0 %v935
    %958 = vmatprep.subr.bf16.mxu0 0
    %959 = vmatpush1.bf16.msra.mxu0 %v936
    %960 = vmatprep.subr.bf16.mxu0 0
    %961 = vmatpush1.bf16.msra.mxu0 %v937
    %962 = vmatprep.subr.bf16.mxu0 0
    %963 = vmatpush1.bf16.msra.mxu0 0
    %964 = vmatprep.subr.bf16.mxu0 0
    %965 = vmatpush1.bf16.msra.mxu0 0
    %966 = vmatprep.subr.bf16.mxu0 0
    %967 = vmatpush1.bf16.msra.mxu0 0
    %968 = vmatprep.subr.bf16.mxu0 0
    %969 = vmatpush1.bf16.msra.mxu0 0
    %970 = vmatprep.subr.bf16.mxu0 0
    %971 = vmatpush1.bf16.msra.mxu0 0
    %972 = vmatprep.subr.bf16.mxu0 0
    %973 = vmatpush1.bf16.msra.mxu0 0
    %974 = vmatprep.subr.bf16.mxu0 0
    %975 = vmatpush1.bf16.msra.mxu0 0
    %976 = vmatprep.subr.bf16.mxu0 0
    %977 = vmatpush1.bf16.msra.mxu0 0
    %978 = vmatprep.mubr.bf16.mxu0 0
    %979 = vmatmul.mubr.bf16.gmra.mrb[0].mxu0 %v875
    %v980 = vpop.f32.mrb[0].mxu0
    %v981 = vadd.f32 %v897, %v980
    %v982 = vpop.f32.mrb[0].mxu0
    %v983 = vpop.f32.mrb[0].mxu0
    %v984 = vadd.f32 %v897, %v983
    %v985 = vpop.f32.mrb[0].mxu0
    %986 = vdwg.mxu0
    %v987 = vmax.f32 %v981, 0.0
    %v988 = vmax.f32 %v984, 0.0
    %v989 = vpack.c.bf16 %v988, %v987
    %s990 = scalar_lea.vmem [#allocation7], 192
    %v991 = vld [vmem:[%s990] sm:$0xf]
    %v992 = vld [vmem:[%s990 + $0x4] sm:$0xf]
    %v993 = vld [vmem:[%s990 + $0x8] sm:$0xf]
    %v994 = vld [vmem:[%s990 + $0xc] sm:$0xf]
    %v995 = vld [vmem:[%s990 + $0x10] sm:$0xf]
    %v996 = vld [vmem:[%s990 + $0x14] sm:$0xf]
    %v997 = vld [vmem:[%s990 + $0x18] sm:$0xf]
    %v998 = vld [vmem:[%s990 + $0x1c] sm:$0xf]
    %v999 = vld [vmem:[%s990 + $0x20] sm:$0xf]
    %v1000 = vld [vmem:[%s990 + $0x24] sm:$0xf]
    %v1001 = vld [vmem:[%s990 + $0x28] sm:$0xf]
    %v1002 = vld [vmem:[%s990 + $0x2c] sm:$0xf]
    %v1003 = vld [vmem:[%s990 + $0x30] sm:$0xf]
    %v1004 = vld [vmem:[%s990 + $0x34] sm:$0xf]
    %v1005 = vld [vmem:[%s990 + $0x38] sm:$0xf]
    %v1006 = vld [vmem:[%s990 + $0x3c] sm:$0xf]
    %v1007 = vld [vmem:[%s3 + $0x4] sm:$0x1]
    %v1008 = vlaneseq
    %v1009 = vshrl.u32 %v1008, 7
    %v1010 = vsub.s32 0, %v1009
    %v1011 = vrot.slane %v1007, %v1010
    %v1028 = vunpack.c.l.b16 %v991
    %v1029 = vunpack.c.l.b16 %v992
    %v1030 = vunpack.c.l.b16 %v993
    %v1031 = vunpack.c.l.b16 %v994
    %v1032 = vunpack.c.l.b16 %v995
    %v1033 = vunpack.c.l.b16 %v996
    %v1034 = vunpack.c.l.b16 %v997
    %v1035 = vunpack.c.l.b16 %v998
    %v1036 = vunpack.c.l.b16 %v999
    %v1037 = vunpack.c.l.b16 %v1000
    %v1038 = vunpack.c.l.b16 %v1001
    %v1039 = vunpack.c.l.b16 %v1002
    %v1040 = vunpack.c.l.b16 %v1003
    %v1041 = vunpack.c.l.b16 %v1004
    %v1042 = vunpack.c.l.b16 %v1005
    %v1043 = vunpack.c.l.b16 %v1006
    %v1044 = vpack.c.b16 %v1029, %v1028
    %v1045 = vpack.c.b16 %v1031, %v1030
    %v1046 = vpack.c.b16 %v1033, %v1032
    %v1047 = vpack.c.b16 %v1035, %v1034
    %v1048 = vpack.c.b16 %v1037, %v1036
    %v1049 = vpack.c.b16 %v1039, %v1038
    %v1050 = vpack.c.b16 %v1041, %v1040
    %v1051 = vpack.c.b16 %v1043, %v1042
    %1060 = vmatprep.subr.bf16.mxu0 0
    %1061 = vmatpush1.bf16.msra.mxu0 %v1044
    %1062 = vmatprep.subr.bf16.mxu0 0
    %1063 = vmatpush1.bf16.msra.mxu0 %v1045
    %1064 = vmatprep.subr.bf16.mxu0 0
    %1065 = vmatpush1.bf16.msra.mxu0 %v1046
    %1066 = vmatprep.subr.bf16.mxu0 0
    %1067 = vmatpush1.bf16.msra.mxu0 %v1047
    %1068 = vmatprep.subr.bf16.mxu0 0
    %1069 = vmatpush1.bf16.msra.mxu0 %v1048
    %1070 = vmatprep.subr.bf16.mxu0 0
    %1071 = vmatpush1.bf16.msra.mxu0 %v1049
    %1072 = vmatprep.subr.bf16.mxu0 0
    %1073 = vmatpush1.bf16.msra.mxu0 %v1050
    %1074 = vmatprep.subr.bf16.mxu0 0
    %1075 = vmatpush1.bf16.msra.mxu0 %v1051
    %1076 = vmatprep.subr.bf16.mxu0 0
    %1077 = vmatpush1.bf16.msra.mxu0 0
    %1078 = vmatprep.subr.bf16.mxu0 0
    %1079 = vmatpush1.bf16.msra.mxu0 0
    %1080 = vmatprep.subr.bf16.mxu0 0
    %1081 = vmatpush1.bf16.msra.mxu0 0
    %1082 = vmatprep.subr.bf16.mxu0 0
    %1083 = vmatpush1.bf16.msra.mxu0 0
    %1084 = vmatprep.subr.bf16.mxu0 0
    %1085 = vmatpush1.bf16.msra.mxu0 0
    %1086 = vmatprep.subr.bf16.mxu0 0
    %1087 = vmatpush1.bf16.msra.mxu0 0
    %1088 = vmatprep.subr.bf16.mxu0 0
    %1089 = vmatpush1.bf16.msra.mxu0 0
    %1090 = vmatprep.subr.bf16.mxu0 0
    %1091 = vmatpush1.bf16.msra.mxu0 0
    %1092 = vmatprep.mubr.bf16.mxu0 0
    %1093 = vmatmul.mubr.bf16.gmra.mrb[0].mxu0 %v989
    %v1094 = vpop.f32.mrb[0].mxu0
    %v1095 = vadd.f32 %v1011, %v1094
    %v1096 = vpop.f32.mrb[0].mxu0
    %v1097 = vpop.f32.mrb[0].mxu0
    %v1098 = vadd.f32 %v1011, %v1097
    %v1099 = vpop.f32.mrb[0].mxu0
    %1100 = vdwg.mxu0
    %v1101 = vmax.f32 %v1095, 0.0
    %v1102 = vmax.f32 %v1098, 0.0
    %v1103 = vpack.c.bf16 %v1102, %v1101
    %s1104 = scalar_lea.vmem [#allocation7], 256
    %v1105 = vld [vmem:[%s1104] sm:$0xf]
    %v1106 = vld [vmem:[%s1104 + $0x4] sm:$0xf]
    %v1107 = vld [vmem:[%s1104 + $0x8] sm:$0xf]
    %v1108 = vld [vmem:[%s1104 + $0xc] sm:$0xf]
    %v1109 = vld [vmem:[%s1104 + $0x10] sm:$0xf]
    %v1110 = vld [vmem:[%s1104 + $0x14] sm:$0xf]
    %v1111 = vld [vmem:[%s1104 + $0x18] sm:$0xf]
    %v1112 = vld [vmem:[%s1104 + $0x1c] sm:$0xf]
    %v1113 = vld [vmem:[%s1104 + $0x20] sm:$0xf]
    %v1114 = vld [vmem:[%s1104 + $0x24] sm:$0xf]
    %v1115 = vld [vmem:[%s1104 + $0x28] sm:$0xf]
    %v1116 = vld [vmem:[%s1104 + $0x2c] sm:$0xf]
    %v1117 = vld [vmem:[%s1104 + $0x30] sm:$0xf]
    %v1118 = vld [vmem:[%s1104 + $0x34] sm:$0xf]
    %v1119 = vld [vmem:[%s1104 + $0x38] sm:$0xf]
    %v1120 = vld [vmem:[%s1104 + $0x3c] sm:$0xf]
    %v1121 = vld [vmem:[%s3 + $0x5] sm:$0x1]
    %v1122 = vlaneseq
    %v1123 = vshrl.u32 %v1122, 7
    %v1124 = vsub.s32 0, %v1123
    %v1125 = vrot.slane %v1121, %v1124
    %v1142 = vunpack.c.l.b16 %v1105
    %v1143 = vunpack.c.l.b16 %v1106
    %v1144 = vunpack.c.l.b16 %v1107
    %v1145 = vunpack.c.l.b16 %v1108
    %v1146 = vunpack.c.l.b16 %v1109
    %v1147 = vunpack.c.l.b16 %v1110
    %v1148 = vunpack.c.l.b16 %v1111
    %v1149 = vunpack.c.l.b16 %v1112
    %v1150 = vunpack.c.l.b16 %v1113
    %v1151 = vunpack.c.l.b16 %v1114
    %v1152 = vunpack.c.l.b16 %v1115
    %v1153 = vunpack.c.l.b16 %v1116
    %v1154 = vunpack.c.l.b16 %v1117
    %v1155 = vunpack.c.l.b16 %v1118
    %v1156 = vunpack.c.l.b16 %v1119
    %v1157 = vunpack.c.l.b16 %v1120
    %v1158 = vpack.c.b16 %v1143, %v1142
    %v1159 = vpack.c.b16 %v1145, %v1144
    %v1160 = vpack.c.b16 %v1147, %v1146
    %v1161 = vpack.c.b16 %v1149, %v1148
    %v1162 = vpack.c.b16 %v1151, %v1150
    %v1163 = vpack.c.b16 %v1153, %v1152
    %v1164 = vpack.c.b16 %v1155, %v1154
    %v1165 = vpack.c.b16 %v1157, %v1156
    %1174 = vmatprep.subr.bf16.mxu0 0
    %1175 = vmatpush1.bf16.msra.mxu0 %v1158
    %1176 = vmatprep.subr.bf16.mxu0 0
    %1177 = vmatpush1.bf16.msra.mxu0 %v1159
    %1178 = vmatprep.subr.bf16.mxu0 0
    %1179 = vmatpush1.bf16.msra.mxu0 %v1160
    %1180 = vmatprep.subr.bf16.mxu0 0
    %1181 = vmatpush1.bf16.msra.mxu0 %v1161
    %1182 = vmatprep.subr.bf16.mxu0 0
    %1183 = vmatpush1.bf16.msra.mxu0 %v1162
    %1184 = vmatprep.subr.bf16.mxu0 0
    %1185 = vmatpush1.bf16.msra.mxu0 %v1163
    %1186 = vmatprep.subr.bf16.mxu0 0
    %1187 = vmatpush1.bf16.msra.mxu0 %v1164
    %1188 = vmatprep.subr.bf16.mxu0 0
    %1189 = vmatpush1.bf16.msra.mxu0 %v1165
    %1190 = vmatprep.subr.bf16.mxu0 0
    %1191 = vmatpush1.bf16.msra.mxu0 0
    %1192 = vmatprep.subr.bf16.mxu0 0
    %1193 = vmatpush1.bf16.msra.mxu0 0
    %1194 = vmatprep.subr.bf16.mxu0 0
    %1195 = vmatpush1.bf16.msra.mxu0 0
    %1196 = vmatprep.subr.bf16.mxu0 0
    %1197 = vmatpush1.bf16.msra.mxu0 0
    %1198 = vmatprep.subr.bf16.mxu0 0
    %1199 = vmatpush1.bf16.msra.mxu0 0
    %1200 = vmatprep.subr.bf16.mxu0 0
    %1201 = vmatpush1.bf16.msra.mxu0 0
    %1202 = vmatprep.subr.bf16.mxu0 0
    %1203 = vmatpush1.bf16.msra.mxu0 0
    %1204 = vmatprep.subr.bf16.mxu0 0
    %1205 = vmatpush1.bf16.msra.mxu0 0
    %1206 = vmatprep.mubr.bf16.mxu0 0
    %1207 = vmatmul.mubr.bf16.gmra.mrb[0].mxu0 %v1103
    %v1208 = vpop.f32.mrb[0].mxu0
    %v1209 = vadd.f32 %v1125, %v1208
    %v1210 = vpop.f32.mrb[0].mxu0
    %v1211 = vpop.f32.mrb[0].mxu0
    %v1212 = vadd.f32 %v1125, %v1211
    %v1213 = vpop.f32.mrb[0].mxu0
    %1214 = vdwg.mxu0
    %1215 = vmax.xlane.f32.xlu0 %v1209
    %v1216 = vpop.xlane.xlu0 %1215
    %1217 = vmax.xlane.f32.xlu0 %v1212
    %v1218 = vpop.xlane.xlu0 %1217
    %v1219 = vsub.f32 %v1209, %v1216
    %v1220 = vsub.f32 %v1212, %v1218
    %v1221 = vmul.f32 %v1219, 1.442695
    %v1222 = vpow.pop %v1221
    %v1223 = vmul.f32 %v1220, 1.442695
    %v1224 = vpow.pop %v1223
    %1225 = vadd.xlane.f32.xlu0 %v1222
    %v1226 = vpop.xlane.xlu0 %1225
    %1227 = vadd.xlane.f32.xlu0 %v1224
    %v1228 = vpop.xlane.xlu0 %1227
    %v1229 = vlog2.pop %v1226
    %v1230 = vmul.f32 %v1229, 0.6931472
    %v1231 = vlog2.pop %v1228
    %v1232 = vmul.f32 %v1231, 0.6931472
    %v1233 = vsub.f32 %v1219, %v1230
    %v1234 = vsub.f32 %v1220, %v1232
    %v1235 = vpack.c.bf16 %v1234, %v1233
    %v1237 = vunpack.c.l.b16 %v1235
    %v1238 = vunpack.c.h.b16 %v1235
    %v1239 = vpack.c.b16 %v1237, %v1237
    %v1240 = vpack.c.b16 %v1238, %v1238
    %1243 = vst [vmem:[#allocation8] sm:$0xf] %v1239
    %1244 = vst [vmem:[#allocation8 + $0x4] sm:$0xf] %v1240
    // Predicated region
    $region30: #{tpu_custom_call.1} parent=1 // pred_check
      _
    $region31: #{tpu_custom_call.1} parent=1 // pred_check_branch
      %1246 = sbr.rel (0) target = $region33
    $region32: #{tpu_custom_call.1} parent=1 // pred_region
      %s1248 = ssub.s32 128, 128
      %1249 = vsyncadd [#allocation4], %s1248
      %s1250 = sshll.u32 [#allocation8], 4
      %s1251 = int_to_ptr.vmem [resolvable:$true] %s1250
      %1256 = dma.vmem_to_hbm [thread:$0]  %s1251, 128, %s4, [#allocation4], 64, 64, 4
    $region33: #{tpu_custom_call.1} parent=1 // pred_fallthru
      _
    // Predicated region
    $region34: #{tpu_custom_call.1} parent=1 // pred_check
      _
    $region35: #{tpu_custom_call.1} parent=1 // pred_check_branch
      %1258 = sbr.rel (0) target = $region37
    $region36: #{tpu_custom_call.1} parent=1 // pred_region
      %1259 = dma.done [#allocation4], 128
    $region37: #{tpu_custom_call.1} parent=1 // pred_fallthru
      _
    %1260 = vsyncpa [#allocation3], 1
    %1261 = vsyncpa [#allocation6], 1
    %1262 = vsyncpa [#allocation4], 1

</llo_original>
